<compile_context>
chip_gen: v7x
topology: tpu7x:2x2x1
jax: 0.10.0
libtpu: 0.0.40
codegen_flags: <defaults>
</compile_context>

<pallas_src>
import functools

import jax
import jax.numpy as jnp
import numpy as np
from jax.experimental import pallas as pl
from jax.experimental.pallas import tpu as pltpu


def _gatv2_precompute_kernel(x_ref, w_ref, a1bd_ref, a2bdt_ref,
                             hid_ref, first_ref, second_ref, *,
                             alpha, mxu_dtype):
    """Once-per-forward projection + attention-vector reductions (all heads fused).

    x_ref:      [N, F]        node features
    w_ref:      [F, H*R]      head-concatenated projection weights (lane-dense)
    a1bd_ref:   [H*R, H] f32  block-diagonal query-side attention vectors
    a2bdt_ref:  [H, H*R] f32  block-diagonal key-side attention vectors (transposed)
    hid_ref:    [N, H*R]      pre-activation hidden reprs (mxu_dtype), concat layout
    first_ref:  [N, H]  f32   query-side logit contribution per head
    second_ref: [H, N]  f32   key-side logit contribution per head
    """
    x = x_ref[...].astype(mxu_dtype)
    w = w_ref[...].astype(mxu_dtype)
    hid = jnp.dot(x, w, preferred_element_type=jnp.float32)           # [N, H*R] f32 acc
    hid_ref[...] = hid.astype(hid_ref.dtype)                          # stored once in mxu_dtype
    # GATv2: LeakyReLU BEFORE the attention dot products (f32 math).
    act = jnp.where(hid > 0, hid, alpha * hid)                        # [N, H*R]
    # first[n, h]  = sum_r act[n, h*R + r] * a1[h, r]   -> one MXU matmul
    first_ref[...] = jnp.dot(act, a1bd_ref[...],
                             preferred_element_type=jnp.float32)      # [N, H]
    # second[h, n] = sum_r act[n, h*R + r] * a2[h, r]   -> one MXU matmul
    second_ref[...] = jax.lax.dot_general(
        a2bdt_ref[...], act, (((1,), (1,)), ((), ())),
        preferred_element_type=jnp.float32)                           # [H, N]


def _gatv2_attention_kernel(adj_ref, first_ref, second_ref, hid_ref, o_ref, *,
                            n_heads, repr_dim, mxu_dtype):
    """One query-row tile of GATv2 attention + aggregation for all heads.

    adj_ref:    [TQ, N]  int8  adjacency rows for this query tile
    first_ref:  [TQ, H]  f32   query-side logits for this tile
    second_ref: [H, N]   f32   key-side logits (grid-invariant)
    hid_ref:    [N, H*R] mxu   pre-activation hidden reprs (grid-invariant)
    o_ref:      [TQ, H*R] f32  concat-layout output tile
    """
    neighbour = adj_ref[...] != 0                              # [TQ, N] bool (vselect mask)
    first = first_ref[...]                                     # [TQ, H]
    second = second_ref[...]                                   # [H, N]
    ones_n = jnp.ones((adj_ref.shape[1], 1), jnp.float32)      # MXU row-sum vector (hoisted)

    outs = []
    for h in range(n_heads):
        logits = first[:, h:h + 1] + second[h:h + 1, :]        # [TQ, N] f32
        # TODO(synk): isolated rows (no self-loop, no neighbours) get a uniform row
        #             here vs. the reference's additive -1e16 mask; identical when
        #             self-loops are present (as in the demo graph).
        logits = jnp.where(neighbour, logits, -1e30)

        # Row softmax over neighbours: max on XLU, sum on MXU, exact reciprocal.
        m = jnp.max(logits, axis=-1, keepdims=True)
        e = jnp.exp(logits - m)
        denom = jax.lax.dot_general(e, ones_n, (((1,), (0,)), ((), ())),
                                    preferred_element_type=jnp.float32)   # [TQ, 1]
        attn = e * pl.reciprocal(denom, approx=False)
        # TODO(synk): nn.Dropout(p=0.6) on attention is train-time stochastic;
        #             implemented here as eval-mode identity.

        # Aggregate the *pre-activation* hidden repr (as in the reference module).
        out_h = jnp.dot(attn.astype(mxu_dtype),
                        hid_ref[:, h * repr_dim:(h + 1) * repr_dim],
                        preferred_element_type=jnp.float32)               # [TQ, R]
        outs.append(out_h)

    # Single full-width (H*R lanes) unmasked store.
    o_ref[...] = jnp.concatenate(outs, axis=-1).astype(o_ref.dtype)


def gatv2_forward(node_matrix, adjacency, W, shared_attention, *,
                  alpha=0.2, attention_aggr="concat", block_q=None,
                  mxu_dtype=jnp.float32, vmem_limit_bytes=None):
    """GATv2 multi-head forward. adjacency should be int8/bool (0 = no edge)."""
    if attention_aggr not in ("concat", "mean"):
        raise ValueError("attention_aggr must be `concat` or `mean`")

    N, F = node_matrix.shape
    H, _, R = W.shape

    if block_q is None:
        block_q = N if N <= 128 else 128
    if block_q != N:
        # int8 adjacency sublane packing is 32 -> query tiles must be 32-aligned
        # (or cover all N, in which case the block is the full array).
        assert N % block_q == 0 and block_q % 32 == 0, (N, block_q)
    num_q = pl.cdiv(N, block_q)

    if adjacency.dtype != jnp.int8:
        # Callers should pass int8/bool to avoid this extra conversion pass.
        adjacency = (adjacency != 0).astype(jnp.int8)

    # Lane-dense parameter layouts, built once outside the kernels (tiny).
    w_flat = jnp.transpose(W, (1, 0, 2)).reshape(F, H * R)          # [F, H*R]
    a1 = shared_attention[:, :R].astype(jnp.float32)                # [H, R]
    a2 = shared_attention[:, R:].astype(jnp.float32)                # [H, R]
    eye = jnp.eye(H, dtype=jnp.float32)
    a1_bd = (a1[:, :, None] * eye[:, None, :]).reshape(H * R, H)    # [H*R, H] block-diag
    a2_bdt = (eye[:, :, None] * a2[None, :, :]).reshape(H, H * R)   # [H, H*R] block-diag^T

    # ---- one-time precompute: fused projection + per-head attention-vector dots ----
    hid, first, second = pl.pallas_call(
        functools.partial(_gatv2_precompute_kernel, alpha=alpha, mxu_dtype=mxu_dtype),
        out_shape=(jax.ShapeDtypeStruct((N, H * R), mxu_dtype),
                   jax.ShapeDtypeStruct((N, H), jnp.float32),
                   jax.ShapeDtypeStruct((H, N), jnp.float32)),
    )(node_matrix, w_flat, a1_bd, a2_bdt)

    # ---- per query-row-tile attention + aggregation; grid is fully parallel ----
    kernel = functools.partial(_gatv2_attention_kernel,
                               n_heads=H, repr_dim=R, mxu_dtype=mxu_dtype)
    out = pl.pallas_call(
        kernel,
        out_shape=jax.ShapeDtypeStruct((N, H * R), jnp.float32),
        grid_spec=pltpu.PrefetchScalarGridSpec(
            num_scalar_prefetch=0,
            grid=(num_q,),
            in_specs=[
                pl.BlockSpec((block_q, N), lambda q: (q, 0)),     # adjacency rows (int8)
                pl.BlockSpec((block_q, H), lambda q: (q, 0)),     # query-side logits
                pl.BlockSpec((H, N), lambda q: (0, 0)),           # key-side logits (shared)
                pl.BlockSpec((N, H * R), lambda q: (0, 0)),       # hidden reprs (shared)
            ],
            out_specs=pl.BlockSpec((block_q, H * R), lambda q: (q, 0)),
        ),
        # No cross-tile scratch dependence anymore -> fully parallel grid
        # (sharded across TensorCores on v7x).
        compiler_params=pltpu.CompilerParams(
            dimension_semantics=("parallel",),
            vmem_limit_bytes=vmem_limit_bytes),
    )(adjacency, first, second, hid)

    if attention_aggr == "concat":
        return out                                   # already [N, H*R] concat layout
    # mean over heads; output is already head-blocked along the feature axis.
    return out.reshape(N, H, R).mean(axis=1)


def _xavier_uniform(key, shape, fan_in, fan_out, gain):
    limit = gain * np.sqrt(6.0 / (fan_in + fan_out))
    return jax.random.uniform(key, shape, dtype=jnp.float32, minval=-limit, maxval=limit)


def _reference_forward(node_matrix, adjacency, W, shared_attention, alpha, aggr):
    """Pure-JAX port of the PyTorch forward (eval mode)."""
    R = W.shape[-1]
    adj = adjacency.astype(jnp.float32)
    hidden = jnp.einsum("jk,ikl->ijl", node_matrix, W)
    act = jnp.where(hidden > 0, hidden, alpha * hidden)
    first = jnp.einsum("ijl,il->ij", act, shared_attention[:, :R])
    second = jnp.einsum("ijl,il->ij", act, shared_attention[:, R:])
    full = first[:, :, None] + second[:, None, :]
    full = full + (-1e16) * (1.0 - adj)[None]
    attn = jax.nn.softmax(full, axis=-1)
    rep = jnp.einsum("ijk,ikl->ijl", attn, hidden)
    if aggr == "concat":
        return jnp.transpose(rep, (1, 0, 2)).reshape(node_matrix.shape[0], -1)
    return jnp.mean(rep, axis=0)


if __name__ == "__main__":
    # Small deterministic problem: N nodes, F input features, R repr dim, H heads.
    N, F, R, H = 64, 32, 32, 4
    alpha = 0.2
    BLOCK_Q = 32  # two query tiles -> exercises the multi-tile parallel grid path

    key = jax.random.PRNGKey(0)
    k_x, k_adj, k_w, k_a = jax.random.split(key, 4)

    node_matrix = jax.random.normal(k_x, (N, F), dtype=jnp.float32)

    # Random symmetric 0/1 adjacency with self-loops, stored as int8.
    adj_rand = jax.random.uniform(k_adj, (N, N))
    adjacency = (adj_rand < 0.3)
    adjacency = adjacency | adjacency.T | jnp.eye(N, dtype=bool)
    adjacency = adjacency.astype(jnp.int8)

    # Deterministic xavier_uniform init (PyTorch fan conventions), gain = sqrt(2/(1+alpha^2)).
    gain = np.sqrt(2.0 / (1.0 + alpha ** 2))
    W = _xavier_uniform(k_w, (H, F, R), fan_in=F * R, fan_out=H * R, gain=gain)
    shared_attention = _xavier_uniform(k_a, (H, 2 * R), fan_in=2 * R, fan_out=H, gain=gain)

    ref_concat = _reference_forward(node_matrix, adjacency, W, shared_attention, alpha, "concat")
    ref_mean = _reference_forward(node_matrix, adjacency, W, shared_attention, alpha, "mean")

    # f32 MXU path: 'concat' aggregation.
    out_concat = jax.block_until_ready(
        gatv2_forward(node_matrix, adjacency, W, shared_attention,
                      alpha=alpha, attention_aggr="concat", block_q=BLOCK_Q))
    assert out_concat.shape == (N, H * R), out_concat.shape
    np.testing.assert_allclose(np.asarray(out_concat), np.asarray(ref_concat),
                               rtol=5e-3, atol=5e-3)

    # f32 MXU path: 'mean' aggregation.
    out_mean = jax.block_until_ready(
        gatv2_forward(node_matrix, adjacency, W, shared_attention,
                      alpha=alpha, attention_aggr="mean", block_q=BLOCK_Q))
    assert out_mean.shape == (N, R), out_mean.shape
    np.testing.assert_allclose(np.asarray(out_mean), np.asarray(ref_mean),
                               rtol=5e-3, atol=5e-3)

    # bf16 MXU-operand variant (bf16 hidden storage, f32 accumulation, f32 softmax math).
    out_bf16 = jax.block_until_ready(
        gatv2_forward(node_matrix, adjacency, W, shared_attention,
                      alpha=alpha, attention_aggr="concat", block_q=BLOCK_Q,
                      mxu_dtype=jnp.bfloat16))
    assert bool(jnp.all(jnp.isfinite(out_bf16)))
    np.testing.assert_allclose(np.asarray(out_bf16), np.asarray(ref_concat),
                               rtol=5e-2, atol=5e-2)

    print("KERNEL_OK")
</pallas_src>

<mosaic_0001>
module attributes {stable_mosaic.version = 11 : i64} {
  func.func @_gatv2_precompute_kernel(%arg0: memref<64x32xf32, #tpu.memory_space<vmem>>, %arg1: memref<32x128xf32, #tpu.memory_space<vmem>>, %arg2: memref<128x4xf32, #tpu.memory_space<vmem>>, %arg3: memref<4x128xf32, #tpu.memory_space<vmem>>, %arg4: memref<64x128xf32, #tpu.memory_space<vmem>>, %arg5: memref<64x4xf32, #tpu.memory_space<vmem>>, %arg6: memref<4x64xf32, #tpu.memory_space<vmem>>) attributes {dimension_semantics = [], scalar_prefetch = 0 : i64, scratch_operands = 0 : i64, tpu.core_type = #tpu.core_type<tc>} {
    %c0 = arith.constant 0 : index
    %c0_0 = arith.constant 0 : index
    %0 = vector.load %arg0[%c0, %c0_0] : memref<64x32xf32, #tpu.memory_space<vmem>>, vector<64x32xf32>
    %c0_1 = arith.constant 0 : index
    %c0_2 = arith.constant 0 : index
    %1 = vector.load %arg1[%c0_1, %c0_2] : memref<32x128xf32, #tpu.memory_space<vmem>>, vector<32x128xf32>
    %cst = arith.constant dense<0.000000e+00> : vector<64x128xf32>
    %2 = tpu.matmul %0, %1, %cst {dimension_numbers = #tpu.dot_dimension_numbers<[1], [0], [0], [1], [0, 0, 1, 1], [], []>} : vector<64x32xf32>, vector<32x128xf32>, vector<64x128xf32> -> vector<64x128xf32>
    %c0_3 = arith.constant 0 : index
    %c0_4 = arith.constant 0 : index
    %3 = vector.load %arg4[%c0_3, %c0_4] : memref<64x128xf32, #tpu.memory_space<vmem>>, vector<64x128xf32>
    tpu.vector_store %arg4[%c0_3, %c0_4], %2 {strides = array<i32>} : memref<64x128xf32, #tpu.memory_space<vmem>>, vector<64x128xf32>,
    %cst_5 = arith.constant 0.000000e+00 : f32
    %4 = vector.broadcast %cst_5 : f32 to vector<64x128xf32>
    %5 = arith.cmpf ogt, %2, %4 : vector<64x128xf32>
    %cst_6 = arith.constant 2.000000e-01 : f32
    %6 = vector.broadcast %cst_6 : f32 to vector<64x128xf32>
    %7 = arith.mulf %6, %2 : vector<64x128xf32>
    %8 = arith.select %5, %2, %7 : vector<64x128xi1>, vector<64x128xf32>
    %c0_7 = arith.constant 0 : index
    %c0_8 = arith.constant 0 : index
    %9 = vector.load %arg2[%c0_7, %c0_8] : memref<128x4xf32, #tpu.memory_space<vmem>>, vector<128x4xf32>
    %cst_9 = arith.constant dense<0.000000e+00> : vector<64x4xf32>
    %10 = tpu.matmul %8, %9, %cst_9 {dimension_numbers = #tpu.dot_dimension_numbers<[1], [0], [0], [1], [0, 0, 1, 1], [], []>} : vector<64x128xf32>, vector<128x4xf32>, vector<64x4xf32> -> vector<64x4xf32>
    %c0_10 = arith.constant 0 : index
    %c0_11 = arith.constant 0 : index
    %11 = vector.load %arg5[%c0_10, %c0_11] : memref<64x4xf32, #tpu.memory_space<vmem>>, vector<64x4xf32>
    tpu.vector_store %arg5[%c0_10, %c0_11], %10 {strides = array<i32>} : memref<64x4xf32, #tpu.memory_space<vmem>>, vector<64x4xf32>,
    %c0_12 = arith.constant 0 : index
    %c0_13 = arith.constant 0 : index
    %12 = vector.load %arg3[%c0_12, %c0_13] : memref<4x128xf32, #tpu.memory_space<vmem>>, vector<4x128xf32>
    %cst_14 = arith.constant dense<0.000000e+00> : vector<4x64xf32>
    %13 = tpu.matmul %12, %8, %cst_14 {dimension_numbers = #tpu.dot_dimension_numbers<[1], [1], [0], [0], [0, 0, 1, 0], [], []>} : vector<4x128xf32>, vector<64x128xf32>, vector<4x64xf32> -> vector<4x64xf32>
    %c0_15 = arith.constant 0 : index
    %c0_16 = arith.constant 0 : index
    %14 = vector.load %arg6[%c0_15, %c0_16] : memref<4x64xf32, #tpu.memory_space<vmem>>, vector<4x64xf32>
    tpu.vector_store %arg6[%c0_15, %c0_16], %13 {strides = array<i32>} : memref<4x64xf32, #tpu.memory_space<vmem>>, vector<4x64xf32>,
    return
  }
}

</mosaic_0001>

<llo_original>
// kernel: tpu_custom_call.1
$region0: #{tpu_custom_call.1}
  #allocation0 [shape = 'u32[]', space=smem, size = 0x4, offset = 0x4, fixed_abs, tag = 'smem constant byte address 0x4 - core index']
  #allocation1 [shape = 'u32[144,128]{1,0:T(1,128)}', space=vmem, size = 0x12000, scoped, tag = 'internal scratch']
  %s0 = inlined_call_operand.vmem [shape: f32[64,32], index: 0, kind: input, shape index: {}]
  %s1 = inlined_call_operand.vmem [shape: f32[32,128], index: 1, kind: input, shape index: {}]
  %s2 = inlined_call_operand.vmem [shape: f32[128,4], index: 2, kind: input, shape index: {}]
  %s3 = inlined_call_operand.vmem [shape: f32[4,128], index: 3, kind: input, shape index: {}]
  %s4 = inlined_call_operand.hbm [shape: f32[64,128], index: 4, kind: output, shape index: {0}]
  %s5 = inlined_call_operand.vmem [shape: f32[64,4], index: 5, kind: output, shape index: {1}]
  %s6 = inlined_call_operand.hbm [shape: f32[4,64], index: 6, kind: output, shape index: {2}]
  %7 = xla_tuple %s4, %s5, %s6
  %s8 = sld [smem:[#allocation0]]
  $region42: #{tpu_custom_call.1} parent=0
    _
  %s10 = ssub.s32 1, %s8
  %s11 = scalar_select 0, %s10, %s8
  $region1: #{tpu_custom_call.1} parent=0
    #allocation2 [shape = 'u8[32768]{0}', space=vmem, size = 0x8000, scoped, tag = 'output window, operand 0, single buffered']
    #allocation3 [shape = 's32[1]{0}', space=sflag, size = 0x4, scoped, tag = 'scoped memory for tpu_custom_call.1']
    #allocation4 [shape = 'u8[2048]{0}', space=vmem, size = 0x800, scoped, tag = 'output window, operand 2, single buffered']
    #allocation5 [shape = 's32[1]{0}', space=sflag, size = 0x4, scoped, tag = 'scoped memory for tpu_custom_call.1']
    %12 = vsyncpa [#allocation3], 0
    %13 = vsyncpa [#allocation5], 0
    // Predicated region
    $region2: #{tpu_custom_call.1} parent=1 // pred_check
      _
    $region3: #{tpu_custom_call.1} parent=1 // pred_check_branch
      %15 = sbr.rel (0) target = $region5
    $region4: #{tpu_custom_call.1} parent=1 // pred_region
      _
    $region5: #{tpu_custom_call.1} parent=1 // pred_fallthru
      _
    // Predicated region
    $region6: #{tpu_custom_call.1} parent=1 // pred_check
      _
    $region7: #{tpu_custom_call.1} parent=1 // pred_check_branch
      %17 = sbr.rel (0) target = $region9
    $region8: #{tpu_custom_call.1} parent=1 // pred_region
      _
    $region9: #{tpu_custom_call.1} parent=1 // pred_fallthru
      _
    // Predicated region
    $region10: #{tpu_custom_call.1} parent=1 // pred_check
      _
    $region11: #{tpu_custom_call.1} parent=1 // pred_check_branch
      %19 = sbr.rel (0) target = $region13
    $region12: #{tpu_custom_call.1} parent=1 // pred_region
      _
    $region13: #{tpu_custom_call.1} parent=1 // pred_fallthru
      _
    // Predicated region
    $region14: #{tpu_custom_call.1} parent=1 // pred_check
      _
    $region15: #{tpu_custom_call.1} parent=1 // pred_check_branch
      %21 = sbr.rel (0) target = $region17
    $region16: #{tpu_custom_call.1} parent=1 // pred_region
      _
    $region17: #{tpu_custom_call.1} parent=1 // pred_fallthru
      _
    %v22 = vld [vmem:[%s0] sm:$0xff]
    %v23 = vld [vmem:[%s0 + $0x8] sm:$0xff]
    %v24 = vld [vmem:[%s0 + $0x10] sm:$0xff]
    %v25 = vld [vmem:[%s0 + $0x18] sm:$0xff]
    %v26 = vld [vmem:[%s0 + $0x20] sm:$0xff]
    %v27 = vld [vmem:[%s0 + $0x28] sm:$0xff]
    %v28 = vld [vmem:[%s0 + $0x30] sm:$0xff]
    %v29 = vld [vmem:[%s0 + $0x38] sm:$0xff]
    %v30 = vld [vmem:[%s1] sm:$0xff]
    %v31 = vld [vmem:[%s1 + $0x8] sm:$0xff]
    %v32 = vld [vmem:[%s1 + $0x10] sm:$0xff]
    %v33 = vld [vmem:[%s1 + $0x18] sm:$0xff]
    %vm34 = vcmask 261120
    %v36 = vsel %vm34, %v22, 0
    %v39 = vsel %vm34, %v23, 0
    %v42 = vsel %vm34, %v24, 0
    %v45 = vsel %vm34, %v25, 0
    %v48 = vsel %vm34, %v26, 0
    %v51 = vsel %vm34, %v27, 0
    %v54 = vsel %vm34, %v28, 0
    %v57 = vsel %vm34, %v29, 0
    %59 = vmatprep.subr.mxu0 0.0
    %60 = vmatpush1.msra.mxu0 %v30
    %61 = vmatprep.subr.mxu0 0.0
    %62 = vmatpush1.msra.mxu0 %v31
    %63 = vmatprep.subr.mxu0 0.0
    %64 = vmatpush1.msra.mxu0 %v32
    %65 = vmatprep.subr.mxu0 0.0
    %66 = vmatpush1.msra.mxu0 %v33
    %67 = vmatprep.subr.mxu0 0.0
    %68 = vmatpush1.msra.mxu0 0.0
    %69 = vmatprep.subr.mxu0 0.0
    %70 = vmatpush1.msra.mxu0 0.0
    %71 = vmatprep.subr.mxu0 0.0
    %72 = vmatpush1.msra.mxu0 0.0
    %73 = vmatprep.subr.mxu0 0.0
    %74 = vmatpush1.msra.mxu0 0.0
    %75 = vmatprep.subr.mxu0 0.0
    %76 = vmatpush1.msra.mxu0 0.0
    %77 = vmatprep.subr.mxu0 0.0
    %78 = vmatpush1.msra.mxu0 0.0
    %79 = vmatprep.subr.mxu0 0.0
    %80 = vmatpush1.msra.mxu0 0.0
    %81 = vmatprep.subr.mxu0 0.0
    %82 = vmatpush1.msra.mxu0 0.0
    %83 = vmatprep.subr.mxu0 0.0
    %84 = vmatpush1.msra.mxu0 0.0
    %85 = vmatprep.subr.mxu0 0.0
    %86 = vmatpush1.msra.mxu0 0.0
    %87 = vmatprep.subr.mxu0 0.0
    %88 = vmatpush1.msra.mxu0 0.0
    %89 = vmatprep.subr.mxu0 0.0
    %90 = vmatpush1.msra.mxu0 0.0
    %91 = vmatprep.subr.mxu0 0.0
    %92 = vmatpush1.msra.mxu0 0.0
    %93 = vmatprep.subr.mxu0 0.0
    %94 = vmatpush1.msra.mxu0 0.0
    %95 = vmatprep.subr.mxu0 0.0
    %96 = vmatpush1.msra.mxu0 0.0
    %97 = vmatprep.subr.mxu0 0.0
    %98 = vmatpush1.msra.mxu0 0.0
    %99 = vmatprep.subr.mxu0 0.0
    %100 = vmatpush1.msra.mxu0 0.0
    %101 = vmatprep.subr.mxu0 0.0
    %102 = vmatpush1.msra.mxu0 0.0
    %103 = vmatprep.subr.mxu0 0.0
    %104 = vmatpush1.msra.mxu0 0.0
    %105 = vmatprep.subr.mxu0 0.0
    %106 = vmatpush1.msra.mxu0 0.0
    %107 = vmatprep.subr.mxu0 0.0
    %108 = vmatpush1.msra.mxu0 0.0
    %109 = vmatprep.subr.mxu0 0.0
    %110 = vmatpush1.msra.mxu0 0.0
    %111 = vmatprep.subr.mxu0 0.0
    %112 = vmatpush1.msra.mxu0 0.0
    %113 = vmatprep.subr.mxu0 0.0
    %114 = vmatpush1.msra.mxu0 0.0
    %115 = vmatprep.subr.mxu0 0.0
    %116 = vmatpush1.msra.mxu0 0.0
    %117 = vmatprep.subr.mxu0 0.0
    %118 = vmatpush1.msra.mxu0 0.0
    %119 = vmatprep.subr.mxu0 0.0
    %120 = vmatpush1.msra.mxu0 0.0
    %121 = vmatprep.subr.mxu0 0.0
    %122 = vmatpush1.msra.mxu0 0.0
    %123 = vmatprep.mubr.f32.mxu0 0.0
    %124 = vmatmul.mubr.f32.gmra.mrb[0].mxu0 %v36
    %v125 = vpop.f32.mrb[0].mxu0
    %v126 = vadd.f32 0.0, %v125
    %v127 = vpop.f32.mrb[0].mxu0
    %128 = vmatprep.mubr.f32.mxu0 0.0
    %129 = vmatmul.mubr.f32.gmra.mrb[0].mxu0 %v39
    %v130 = vpop.f32.mrb[0].mxu0
    %v131 = vadd.f32 0.0, %v130
    %v132 = vpop.f32.mrb[0].mxu0
    %133 = vmatprep.mubr.f32.mxu0 0.0
    %134 = vmatmul.mubr.f32.gmra.mrb[0].mxu0 %v42
    %v135 = vpop.f32.mrb[0].mxu0
    %v136 = vadd.f32 0.0, %v135
    %v137 = vpop.f32.mrb[0].mxu0
    %138 = vmatprep.mubr.f32.mxu0 0.0
    %139 = vmatmul.mubr.f32.gmra.mrb[0].mxu0 %v45
    %v140 = vpop.f32.mrb[0].mxu0
    %v141 = vadd.f32 0.0, %v140
    %v142 = vpop.f32.mrb[0].mxu0
    %143 = vmatprep.mubr.f32.mxu0 0.0
    %144 = vmatmul.mubr.f32.gmra.mrb[0].mxu0 %v48
    %v145 = vpop.f32.mrb[0].mxu0
    %v146 = vadd.f32 0.0, %v145
    %v147 = vpop.f32.mrb[0].mxu0
    %148 = vmatprep.mubr.f32.mxu0 0.0
    %149 = vmatmul.mubr.f32.gmra.mrb[0].mxu0 %v51
    %v150 = vpop.f32.mrb[0].mxu0
    %v151 = vadd.f32 0.0, %v150
    %v152 = vpop.f32.mrb[0].mxu0
    %153 = vmatprep.mubr.f32.mxu0 0.0
    %154 = vmatmul.mubr.f32.gmra.mrb[0].mxu0 %v54
    %v155 = vpop.f32.mrb[0].mxu0
    %v156 = vadd.f32 0.0, %v155
    %v157 = vpop.f32.mrb[0].mxu0
    %158 = vmatprep.mubr.f32.mxu0 0.0
    %159 = vmatmul.mubr.f32.gmra.mrb[0].mxu0 %v57
    %v160 = vpop.f32.mrb[0].mxu0
    %v161 = vadd.f32 0.0, %v160
    %v162 = vpop.f32.mrb[0].mxu0
    %163 = vdwg.mxu0
    %164 = vst [vmem:[#allocation2] sm:$0xff] %v126
    %165 = vst [vmem:[#allocation2 + $0x8] sm:$0xff] %v131
    %166 = vst [vmem:[#allocation2 + $0x10] sm:$0xff] %v136
    %167 = vst [vmem:[#allocation2 + $0x18] sm:$0xff] %v141
    %168 = vst [vmem:[#allocation2 + $0x20] sm:$0xff] %v146
    %169 = vst [vmem:[#allocation2 + $0x28] sm:$0xff] %v151
    %170 = vst [vmem:[#allocation2 + $0x30] sm:$0xff] %v156
    %171 = vst [vmem:[#allocation2 + $0x38] sm:$0xff] %v161
    %vm172 = vcmp.gt.f32.partialorder %v126, 0.0
    %vm173 = vcmp.gt.f32.partialorder %v131, 0.0
    %vm174 = vcmp.gt.f32.partialorder %v136, 0.0
    %vm175 = vcmp.gt.f32.partialorder %v141, 0.0
    %vm176 = vcmp.gt.f32.partialorder %v146, 0.0
    %vm177 = vcmp.gt.f32.partialorder %v151, 0.0
    %vm178 = vcmp.gt.f32.partialorder %v156, 0.0
    %vm179 = vcmp.gt.f32.partialorder %v161, 0.0
    %v180 = vmul.f32 %v126, 0.2
    %v181 = vmul.f32 %v131, 0.2
    %v182 = vmul.f32 %v136, 0.2
    %v183 = vmul.f32 %v141, 0.2
    %v184 = vmul.f32 %v146, 0.2
    %v185 = vmul.f32 %v151, 0.2
    %v186 = vmul.f32 %v156, 0.2
    %v187 = vmul.f32 %v161, 0.2
    %v188 = vsel %vm172, %v126, %v180
    %v189 = vsel %vm173, %v131, %v181
    %v190 = vsel %vm174, %v136, %v182
    %v191 = vsel %vm175, %v141, %v183
    %v192 = vsel %vm176, %v146, %v184
    %v193 = vsel %vm177, %v151, %v185
    %v194 = vsel %vm178, %v156, %v186
    %v195 = vsel %vm179, %v161, %v187
    %v196 = vld [vmem:[%s2] sm:$0xff]
    %v197 = vld [vmem:[%s2 + $0x8] sm:$0xff]
    %v198 = vld [vmem:[%s2 + $0x10] sm:$0xff]
    %v199 = vld [vmem:[%s2 + $0x18] sm:$0xff]
    %v200 = vld [vmem:[%s2 + $0x20] sm:$0xff]
    %v201 = vld [vmem:[%s2 + $0x28] sm:$0xff]
    %v202 = vld [vmem:[%s2 + $0x30] sm:$0xff]
    %v203 = vld [vmem:[%s2 + $0x38] sm:$0xff]
    %v204 = vld [vmem:[%s2 + $0x40] sm:$0xff]
    %v205 = vld [vmem:[%s2 + $0x48] sm:$0xff]
    %v206 = vld [vmem:[%s2 + $0x50] sm:$0xff]
    %v207 = vld [vmem:[%s2 + $0x58] sm:$0xff]
    %v208 = vld [vmem:[%s2 + $0x60] sm:$0xff]
    %v209 = vld [vmem:[%s2 + $0x68] sm:$0xff]
    %v210 = vld [vmem:[%s2 + $0x70] sm:$0xff]
    %v211 = vld [vmem:[%s2 + $0x78] sm:$0xff]
    %212 = vmatprep.subr.mxu0 0.0
    %213 = vmatpush1.msra.mxu0 %v196
    %214 = vmatprep.subr.mxu0 0.0
    %215 = vmatpush1.msra.mxu0 %v197
    %216 = vmatprep.subr.mxu0 0.0
    %217 = vmatpush1.msra.mxu0 %v198
    %218 = vmatprep.subr.mxu0 0.0
    %219 = vmatpush1.msra.mxu0 %v199
    %220 = vmatprep.subr.mxu0 0.0
    %221 = vmatpush1.msra.mxu0 %v200
    %222 = vmatprep.subr.mxu0 0.0
    %223 = vmatpush1.msra.mxu0 %v201
    %224 = vmatprep.subr.mxu0 0.0
    %225 = vmatpush1.msra.mxu0 %v202
    %226 = vmatprep.subr.mxu0 0.0
    %227 = vmatpush1.msra.mxu0 %v203
    %228 = vmatprep.subr.mxu0 0.0
    %229 = vmatpush1.msra.mxu0 %v204
    %230 = vmatprep.subr.mxu0 0.0
    %231 = vmatpush1.msra.mxu0 %v205
    %232 = vmatprep.subr.mxu0 0.0
    %233 = vmatpush1.msra.mxu0 %v206
    %234 = vmatprep.subr.mxu0 0.0
    %235 = vmatpush1.msra.mxu0 %v207
    %236 = vmatprep.subr.mxu0 0.0
    %237 = vmatpush1.msra.mxu0 %v208
    %238 = vmatprep.subr.mxu0 0.0
    %239 = vmatpush1.msra.mxu0 %v209
    %240 = vmatprep.subr.mxu0 0.0
    %241 = vmatpush1.msra.mxu0 %v210
    %242 = vmatprep.subr.mxu0 0.0
    %243 = vmatpush1.msra.mxu0 %v211
    %244 = vmatprep.subr.mxu0 0.0
    %245 = vmatpush1.msra.mxu0 0.0
    %246 = vmatprep.subr.mxu0 0.0
    %247 = vmatpush1.msra.mxu0 0.0
    %248 = vmatprep.subr.mxu0 0.0
    %249 = vmatpush1.msra.mxu0 0.0
    %250 = vmatprep.subr.mxu0 0.0
    %251 = vmatpush1.msra.mxu0 0.0
    %252 = vmatprep.subr.mxu0 0.0
    %253 = vmatpush1.msra.mxu0 0.0
    %254 = vmatprep.subr.mxu0 0.0
    %255 = vmatpush1.msra.mxu0 0.0
    %256 = vmatprep.subr.mxu0 0.0
    %257 = vmatpush1.msra.mxu0 0.0
    %258 = vmatprep.subr.mxu0 0.0
    %259 = vmatpush1.msra.mxu0 0.0
    %260 = vmatprep.subr.mxu0 0.0
    %261 = vmatpush1.msra.mxu0 0.0
    %262 = vmatprep.subr.mxu0 0.0
    %263 = vmatpush1.msra.mxu0 0.0
    %264 = vmatprep.subr.mxu0 0.0
    %265 = vmatpush1.msra.mxu0 0.0
    %266 = vmatprep.subr.mxu0 0.0
    %267 = vmatpush1.msra.mxu0 0.0
    %268 = vmatprep.subr.mxu0 0.0
    %269 = vmatpush1.msra.mxu0 0.0
    %270 = vmatprep.subr.mxu0 0.0
    %271 = vmatpush1.msra.mxu0 0.0
    %272 = vmatprep.subr.mxu0 0.0
    %273 = vmatpush1.msra.mxu0 0.0
    %274 = vmatprep.subr.mxu0 0.0
    %275 = vmatpush1.msra.mxu0 0.0
    %276 = vmatprep.mubr.f32.mxu0 0.0
    %277 = vmatmul.mubr.f32.gmra.mrb[0].mxu0 %v188
    %v278 = vpop.f32.mrb[0].mxu0
    %v279 = vadd.f32 0.0, %v278
    %v280 = vpop.f32.mrb[0].mxu0
    %281 = vmatprep.mubr.f32.mxu0 0.0
    %282 = vmatmul.mubr.f32.gmra.mrb[0].mxu0 %v189
    %v283 = vpop.f32.mrb[0].mxu0
    %v284 = vadd.f32 0.0, %v283
    %v285 = vpop.f32.mrb[0].mxu0
    %286 = vmatprep.mubr.f32.mxu0 0.0
    %287 = vmatmul.mubr.f32.gmra.mrb[0].mxu0 %v190
    %v288 = vpop.f32.mrb[0].mxu0
    %v289 = vadd.f32 0.0, %v288
    %v290 = vpop.f32.mrb[0].mxu0
    %291 = vmatprep.mubr.f32.mxu0 0.0
    %292 = vmatmul.mubr.f32.gmra.mrb[0].mxu0 %v191
    %v293 = vpop.f32.mrb[0].mxu0
    %v294 = vadd.f32 0.0, %v293
    %v295 = vpop.f32.mrb[0].mxu0
    %296 = vmatprep.mubr.f32.mxu0 0.0
    %297 = vmatmul.mubr.f32.gmra.mrb[0].mxu0 %v192
    %v298 = vpop.f32.mrb[0].mxu0
    %v299 = vadd.f32 0.0, %v298
    %v300 = vpop.f32.mrb[0].mxu0
    %301 = vmatprep.mubr.f32.mxu0 0.0
    %302 = vmatmul.mubr.f32.gmra.mrb[0].mxu0 %v193
    %v303 = vpop.f32.mrb[0].mxu0
    %v304 = vadd.f32 0.0, %v303
    %v305 = vpop.f32.mrb[0].mxu0
    %306 = vmatprep.mubr.f32.mxu0 0.0
    %307 = vmatmul.mubr.f32.gmra.mrb[0].mxu0 %v194
    %v308 = vpop.f32.mrb[0].mxu0
    %v309 = vadd.f32 0.0, %v308
    %v310 = vpop.f32.mrb[0].mxu0
    %311 = vmatprep.mubr.f32.mxu0 0.0
    %312 = vmatmul.mubr.f32.gmra.mrb[0].mxu0 %v195
    %v313 = vpop.f32.mrb[0].mxu0
    %v314 = vadd.f32 0.0, %v313
    %v315 = vpop.f32.mrb[0].mxu0
    %316 = vdwg.mxu0
    %vm317 = vcmask 31744
    %318 = vst.msk [vmem:[%s5] sm:$0xff] %vm317, %v279
    %319 = vst.msk [vmem:[%s5 + $0x8] sm:$0xff] %vm317, %v284
    %320 = vst.msk [vmem:[%s5 + $0x10] sm:$0xff] %vm317, %v289
    %321 = vst.msk [vmem:[%s5 + $0x18] sm:$0xff] %vm317, %v294
    %322 = vst.msk [vmem:[%s5 + $0x20] sm:$0xff] %vm317, %v299
    %323 = vst.msk [vmem:[%s5 + $0x28] sm:$0xff] %vm317, %v304
    %324 = vst.msk [vmem:[%s5 + $0x30] sm:$0xff] %vm317, %v309
    %325 = vst.msk [vmem:[%s5 + $0x38] sm:$0xff] %vm317, %v314
    %v326 = vld [vmem:[%s3] sm:$0xf]
    %327 = vmatprep.subr.mxu0 0.0
    %328 = vmatpush1.xpose.msra.mxu0 %v188
    %329 = vmatprep.subr.mxu0 0.0
    %330 = vmatpush1.xpose.msra.mxu0 %v189
    %331 = vmatprep.subr.mxu0 0.0
    %332 = vmatpush1.xpose.msra.mxu0 %v190
    %333 = vmatprep.subr.mxu0 0.0
    %334 = vmatpush1.xpose.msra.mxu0 %v191
    %335 = vmatprep.subr.mxu0 0.0
    %336 = vmatpush1.xpose.msra.mxu0 %v192
    %337 = vmatprep.subr.mxu0 0.0
    %338 = vmatpush1.xpose.msra.mxu0 %v193
    %339 = vmatprep.subr.mxu0 0.0
    %340 = vmatpush1.xpose.msra.mxu0 %v194
    %341 = vmatprep.subr.mxu0 0.0
    %342 = vmatpush1.xpose.msra.mxu0 %v195
    %343 = vmatprep.subr.mxu0 0.0
    %344 = vmatpush1.xpose.msra.mxu0 0.0
    %345 = vmatprep.subr.mxu0 0.0
    %346 = vmatpush1.xpose.msra.mxu0 0.0
    %347 = vmatprep.subr.mxu0 0.0
    %348 = vmatpush1.xpose.msra.mxu0 0.0
    %349 = vmatprep.subr.mxu0 0.0
    %350 = vmatpush1.xpose.msra.mxu0 0.0
    %351 = vmatprep.subr.mxu0 0.0
    %352 = vmatpush1.xpose.msra.mxu0 0.0
    %353 = vmatprep.subr.mxu0 0.0
    %354 = vmatpush1.xpose.msra.mxu0 0.0
    %355 = vmatprep.subr.mxu0 0.0
    %356 = vmatpush1.xpose.msra.mxu0 0.0
    %357 = vmatprep.subr.mxu0 0.0
    %358 = vmatpush1.xpose.msra.mxu0 0.0
    %359 = vmatprep.subr.mxu0 0.0
    %360 = vmatpush1.xpose.msra.mxu0 0.0
    %361 = vmatprep.subr.mxu0 0.0
    %362 = vmatpush1.xpose.msra.mxu0 0.0
    %363 = vmatprep.subr.mxu0 0.0
    %364 = vmatpush1.xpose.msra.mxu0 0.0
    %365 = vmatprep.subr.mxu0 0.0
    %366 = vmatpush1.xpose.msra.mxu0 0.0
    %367 = vmatprep.subr.mxu0 0.0
    %368 = vmatpush1.xpose.msra.mxu0 0.0
    %369 = vmatprep.subr.mxu0 0.0
    %370 = vmatpush1.xpose.msra.mxu0 0.0
    %371 = vmatprep.subr.mxu0 0.0
    %372 = vmatpush1.xpose.msra.mxu0 0.0
    %373 = vmatprep.subr.mxu0 0.0
    %374 = vmatpush1.xpose.msra.mxu0 0.0
    %375 = vmatprep.subr.mxu0 0.0
    %376 = vmatpush1.xpose.msra.mxu0 0.0
    %377 = vmatprep.subr.mxu0 0.0
    %378 = vmatpush1.xpose.msra.mxu0 0.0
    %379 = vmatprep.subr.mxu0 0.0
    %380 = vmatpush1.xpose.msra.mxu0 0.0
    %381 = vmatprep.subr.mxu0 0.0
    %382 = vmatpush1.xpose.msra.mxu0 0.0
    %383 = vmatprep.subr.mxu0 0.0
    %384 = vmatpush1.xpose.msra.mxu0 0.0
    %385 = vmatprep.subr.mxu0 0.0
    %386 = vmatpush1.xpose.msra.mxu0 0.0
    %387 = vmatprep.subr.mxu0 0.0
    %388 = vmatpush1.xpose.msra.mxu0 0.0
    %389 = vmatprep.subr.mxu0 0.0
    %390 = vmatpush1.xpose.msra.mxu0 0.0
    %391 = vmatprep.mubr.f32.mxu0 0.0
    %392 = vmatmul.mubr.f32.gmra.mrb[0].mxu0 %v326
    %v393 = vpop.f32.mrb[0].mxu0
    %v394 = vadd.f32 0.0, %v393
    %v395 = vpop.f32.mrb[0].mxu0
    %396 = vdwg.mxu0
    %vm397 = vcmask 519168
    %398 = vst.msk [vmem:[#allocation4] sm:$0xf] %vm397, %v394
    // Predicated region
    $region18: #{tpu_custom_call.1} parent=1 // pred_check
      _
    $region19: #{tpu_custom_call.1} parent=1 // pred_check_branch
      %400 = sbr.rel (0) target = $region21
    $region20: #{tpu_custom_call.1} parent=1 // pred_region
      %s402 = ssub.s32 1024, 1024
      %403 = vsyncadd [#allocation3], %s402
      %s404 = sshll.u32 [#allocation2], 4
      %s405 = int_to_ptr.vmem [resolvable:$true] %s404
      %410 = dma.vmem_to_hbm [thread:$0]  %s405, 1024, %s4, [#allocation3], 128, 128, 8
    $region21: #{tpu_custom_call.1} parent=1 // pred_fallthru
      _
    // Predicated region
    $region22: #{tpu_custom_call.1} parent=1 // pred_check
      _
    $region23: #{tpu_custom_call.1} parent=1 // pred_check_branch
      %412 = sbr.rel (0) target = $region25
    $region24: #{tpu_custom_call.1} parent=1 // pred_region
      _
    $region25: #{tpu_custom_call.1} parent=1 // pred_fallthru
      _
    // Predicated region
    $region26: #{tpu_custom_call.1} parent=1 // pred_check
      _
    $region27: #{tpu_custom_call.1} parent=1 // pred_check_branch
      %414 = sbr.rel (0) target = $region29
    $region28: #{tpu_custom_call.1} parent=1 // pred_region
      %s416 = ssub.s32 64, 64
      %417 = vsyncadd [#allocation5], %s416
      %s419 = sshll.u32 [#allocation4], 4
      %s420 = int_to_ptr.vmem [resolvable:$true] %s419
      %422 = dma.vmem_to_hbm [thread:$0]  %s420, 64, %s6, [#allocation5]
    $region29: #{tpu_custom_call.1} parent=1 // pred_fallthru
      _
    // Predicated region
    $region30: #{tpu_custom_call.1} parent=1 // pred_check
      _
    $region31: #{tpu_custom_call.1} parent=1 // pred_check_branch
      %424 = sbr.rel (0) target = $region33
    $region32: #{tpu_custom_call.1} parent=1 // pred_region
      %425 = dma.done [#allocation3], 1024
    $region33: #{tpu_custom_call.1} parent=1 // pred_fallthru
      _
    // Predicated region
    $region34: #{tpu_custom_call.1} parent=1 // pred_check
      _
    $region35: #{tpu_custom_call.1} parent=1 // pred_check_branch
      %427 = sbr.rel (0) target = $region37
    $region36: #{tpu_custom_call.1} parent=1 // pred_region
      _
    $region37: #{tpu_custom_call.1} parent=1 // pred_fallthru
      _
    // Predicated region
    $region38: #{tpu_custom_call.1} parent=1 // pred_check
      _
    $region39: #{tpu_custom_call.1} parent=1 // pred_check_branch
      %429 = sbr.rel (0) target = $region41
    $region40: #{tpu_custom_call.1} parent=1 // pred_region
      %430 = dma.done [#allocation5], 64
    $region41: #{tpu_custom_call.1} parent=1 // pred_fallthru
      _
    %431 = vsyncpa [#allocation3], 1
    %432 = vsyncpa [#allocation5], 1

</llo_original>
